<compile_context>
chip_gen: v5e
topology: v5e:2x2
jax: 0.10.0
libtpu: 0.0.40
codegen_flags: <defaults>
</compile_context>

<pallas_src>
import jax
import jax.numpy as jnp
from jax import lax
from jax.experimental import pallas as pl
from jax.experimental.pallas import tpu as pltpu

LN_EPS = 1e-5  # torch.nn.LayerNorm default


def _round_up(x, m):
    return ((x + m - 1) // m) * m


def actor_kernel(x_ref,
                 w1_ref, p1_ref,     # p1 = [bias1; gamma1; beta1]  -> [3, fc1] (f32)
                 w2_ref, p2_ref,     # p2 = [bias2; gamma2; beta2]  -> [3, fc2] (f32)
                 w3_ref, b3_ref,     # final projection, unpadded (fc2, a_dim)
                 o_ref):
    x = x_ref[...]                   # [TB, s_dim], f32 or bf16

    def layernorm_relu(h, prm_ref):
        # h is the pre-bias Linear output (f32); bias is added before LN (matches torch).
        n = h.shape[-1]
        h = h + prm_ref[0:1, :]
        # Row reductions on the MXU (ones-column matmuls) instead of the 2-unit XLU.
        ones_col = jnp.ones((n, 1), jnp.float32)
        mu = jnp.dot(h, ones_col, preferred_element_type=jnp.float32) * (1.0 / n)   # [TB,1]
        d = h - mu
        var = jnp.dot(d * d, ones_col, preferred_element_type=jnp.float32) * (1.0 / n)
        hn = d * lax.rsqrt(var + LN_EPS) * prm_ref[1:2, :] + prm_ref[2:3, :]
        return jnp.maximum(hn, 0.0)

    # fc1 + ln1 + relu
    h1 = jnp.dot(x, w1_ref[...], preferred_element_type=jnp.float32)
    h1 = layernorm_relu(h1, p1_ref)

    # fc2 + ln2 + relu  (cast activation to weight dtype: no-op in f32, bf16 otherwise)
    h2 = jnp.dot(h1.astype(w2_ref.dtype), w2_ref[...], preferred_element_type=jnp.float32)
    h2 = layernorm_relu(h2, p2_ref)

    # out + tanh (a_dim output lanes, masked in-kernel store, dense row writeback)
    y = jnp.dot(h2.astype(w3_ref.dtype), w3_ref[...],
                preferred_element_type=jnp.float32) + b3_ref[...]
    o_ref[...] = jnp.tanh(y).astype(o_ref.dtype)


def prepare_params(params, *, matmul_dtype=jnp.float32):
    """One-time parameter packing, hoisted out of the per-call forward.

    Packs (bias, gamma, beta) per LN layer into a single [3, dim] buffer and
    optionally casts the matmul weights to bf16 (LN params / final bias / all
    elementwise math stay f32)."""
    p1 = jnp.concatenate([params["b1"], params["g1"], params["be1"]], axis=0).astype(jnp.float32)
    p2 = jnp.concatenate([params["b2"], params["g2"], params["be2"]], axis=0).astype(jnp.float32)
    return dict(
        w1=params["w1"].astype(matmul_dtype),
        w2=params["w2"].astype(matmul_dtype),
        w3=params["w3"].astype(matmul_dtype),
        p1=p1,
        p2=p2,
        b3=params["b3"].astype(jnp.float32),
    )


def _pick_tile(batch, block_batch):
    """Pick the batch tile. Avoids any zero-pad copy of x whenever batch <= block_batch."""
    if batch > block_batch:
        return block_batch                       # may require padding to a multiple
    if batch >= 1024 and batch % 16 == 0:
        return batch // 2                        # >=2 grid steps -> both v7x TCs, no padding
    return batch                                 # single tile == full batch dim, no padding


def actor_forward(x, packed, *, block_batch=2048):
    """x: [batch, s_dim]. packed: output of prepare_params()."""
    batch, s_dim = x.shape
    w1, w2, w3 = packed["w1"], packed["w2"], packed["w3"]
    p1, p2, b3 = packed["p1"], packed["p2"], packed["b3"]
    fc1, fc2, a_dim = w1.shape[1], w2.shape[1], w3.shape[1]

    x = x.astype(w1.dtype)

    tb = _pick_tile(batch, block_batch)
    padded_batch = _round_up(batch, tb)
    if padded_batch != batch:
        # Only reached for batch > block_batch with a non-dividing tile; pick a
        # block_batch that divides your batch to skip this extra HBM pass on x.
        x = jnp.zeros((padded_batch, s_dim), x.dtype).at[:batch].set(x)

    grid = (padded_batch // tb,)

    def resident(shape):
        # weight/param blocks: same block index every grid step -> stays VMEM-resident
        return pl.BlockSpec(shape, lambda i: (0, 0))

    out = pl.pallas_call(
        actor_kernel,
        out_shape=jax.ShapeDtypeStruct((padded_batch, a_dim), jnp.float32),
        grid=grid,
        in_specs=[
            pl.BlockSpec((tb, s_dim), lambda i: (i, 0)),   # x: batch-tiled, double-buffered
            resident((s_dim, fc1)),
            resident((3, fc1)),
            resident((fc1, fc2)),
            resident((3, fc2)),
            resident((fc2, a_dim)),
            resident((1, a_dim)),
        ],
        out_specs=pl.BlockSpec((tb, a_dim), lambda i: (i, 0)),
        compiler_params=pltpu.CompilerParams(
            dimension_semantics=("parallel",)),            # shard batch tiles across v7x TCs
        # NOTE: working set at tb=2048 is well under the scoped-VMEM default on all
        # generations; if you push tb beyond ~8K rows set vmem_limit_bytes here.
    )(x, w1, p1, w2, p2, w3, b3)

    if padded_batch != batch:
        out = out[:batch]
    return out


def init_params(key, s_dim, a_dim, fc1_dim, fc2_dim):
    """Deterministic synthetic init mimicking nn.Linear (uniform +/- 1/sqrt(fan_in))
    and nn.LayerNorm (gamma=1, beta=0)."""
    ks = jax.random.split(key, 6)

    def linear(kw, kb, fan_in, fan_out):
        bound = 1.0 / jnp.sqrt(fan_in)
        w = jax.random.uniform(kw, (fan_in, fan_out), jnp.float32, -bound, bound)
        b = jax.random.uniform(kb, (1, fan_out), jnp.float32, -bound, bound)
        return w, b

    w1, b1 = linear(ks[0], ks[1], s_dim, fc1_dim)
    w2, b2 = linear(ks[2], ks[3], fc1_dim, fc2_dim)
    w3, b3 = linear(ks[4], ks[5], fc2_dim, a_dim)

    return dict(
        w1=w1, b1=b1, g1=jnp.ones((1, fc1_dim), jnp.float32), be1=jnp.zeros((1, fc1_dim), jnp.float32),
        w2=w2, b2=b2, g2=jnp.ones((1, fc2_dim), jnp.float32), be2=jnp.zeros((1, fc2_dim), jnp.float32),
        w3=w3, b3=b3,
    )


def actor_ref(x, p):
    """Pure-JAX reference of the PyTorch forward."""
    def ln(h, g, b):
        mu = jnp.mean(h, -1, keepdims=True)
        var = jnp.mean((h - mu) ** 2, -1, keepdims=True)
        return (h - mu) / jnp.sqrt(var + LN_EPS) * g + b

    h = jax.nn.relu(ln(x @ p["w1"] + p["b1"], p["g1"], p["be1"]))
    h = jax.nn.relu(ln(h @ p["w2"] + p["b2"], p["g2"], p["be2"]))
    return jnp.tanh(h @ p["w3"] + p["b3"])


if __name__ == "__main__":
    # Small shapes consistent with the module: s_dim=8 obs features, a_dim=4 actions,
    # fc1_dim=fc2_dim=32 hidden, batch=2.
    batch, s_dim, a_dim, fc1_dim, fc2_dim = 2, 8, 4, 32, 32

    key = jax.random.PRNGKey(0)
    kx, kp = jax.random.split(key)
    x = jax.random.normal(kx, (batch, s_dim), jnp.float32)
    params = init_params(kp, s_dim, a_dim, fc1_dim, fc2_dim)

    # One-time packing (hoisted out of the per-call forward), then the forward itself.
    packed = prepare_params(params)
    fwd = jax.jit(actor_forward)

    out = jax.block_until_ready(fwd(x, packed))
    ref = actor_ref(x, params)
    assert out.shape == (batch, a_dim), out.shape
    assert jnp.allclose(out, ref, atol=1e-5, rtol=1e-5), (out, ref)

    # Optional reduced-precision matmul path (bf16 weights/x, f32 LN & tanh): smoke check.
    packed_bf16 = prepare_params(params, matmul_dtype=jnp.bfloat16)
    out_bf16 = jax.block_until_ready(fwd(x, packed_bf16))
    assert out_bf16.shape == (batch, a_dim)
    assert bool(jnp.all(jnp.isfinite(out_bf16)))
    assert jnp.allclose(out_bf16, ref, atol=0.1, rtol=0.1)

    print("KERNEL_OK")
</pallas_src>

<mosaic_0001>
module attributes {stable_mosaic.version = 11 : i64} {
  func.func @actor_kernel(%arg0: i32, %arg1: memref<2x8xf32, #tpu.memory_space<vmem>>, %arg2: memref<8x32xf32, #tpu.memory_space<vmem>>, %arg3: memref<3x32xf32, #tpu.memory_space<vmem>>, %arg4: memref<32x32xf32, #tpu.memory_space<vmem>>, %arg5: memref<3x32xf32, #tpu.memory_space<vmem>>, %arg6: memref<32x4xf32, #tpu.memory_space<vmem>>, %arg7: memref<1x4xf32, #tpu.memory_space<vmem>>, %arg8: memref<2x4xf32, #tpu.memory_space<vmem>>) attributes {dimension_semantics = [#tpu.dimension_semantics<parallel>], iteration_bounds = array<i64: 1>, scalar_prefetch = 0 : i64, scratch_operands = 0 : i64, tpu.core_type = #tpu.core_type<tc>, window_params = [{transform_indices = @transform_0, window_bounds = array<i64: 2, 8>}, {pipeline_mode = #tpu.pipeline_mode<synchronous>, transform_indices = @transform_1, window_bounds = array<i64: 8, 32>}, {pipeline_mode = #tpu.pipeline_mode<synchronous>, transform_indices = @transform_2, window_bounds = array<i64: 3, 32>}, {pipeline_mode = #tpu.pipeline_mode<synchronous>, transform_indices = @transform_3, window_bounds = array<i64: 32, 32>}, {pipeline_mode = #tpu.pipeline_mode<synchronous>, transform_indices = @transform_4, window_bounds = array<i64: 3, 32>}, {pipeline_mode = #tpu.pipeline_mode<synchronous>, transform_indices = @transform_5, window_bounds = array<i64: 32, 4>}, {pipeline_mode = #tpu.pipeline_mode<synchronous>, transform_indices = @transform_6, window_bounds = array<i64: 1, 4>}, {transform_indices = @transform_7, window_bounds = array<i64: 2, 4>}]} {
    %c0 = arith.constant 0 : index
    %c0_0 = arith.constant 0 : index
    %0 = vector.load %arg1[%c0, %c0_0] : memref<2x8xf32, #tpu.memory_space<vmem>>, vector<2x8xf32>
    %c0_1 = arith.constant 0 : index
    %c0_2 = arith.constant 0 : index
    %1 = vector.load %arg2[%c0_1, %c0_2] : memref<8x32xf32, #tpu.memory_space<vmem>>, vector<8x32xf32>
    %cst = arith.constant dense<0.000000e+00> : vector<2x32xf32>
    %2 = tpu.matmul %0, %1, %cst {dimension_numbers = #tpu.dot_dimension_numbers<[1], [0], [0], [1], [0, 0, 1, 1], [], []>} : vector<2x8xf32>, vector<8x32xf32>, vector<2x32xf32> -> vector<2x32xf32>
    %c0_3 = arith.constant 0 : index
    %c0_4 = arith.constant 0 : index
    %3 = vector.load %arg3[%c0_3, %c0_4] : memref<3x32xf32, #tpu.memory_space<vmem>>, vector<1x32xf32>
    %4 = vector.broadcast %3 : vector<1x32xf32> to vector<2x32xf32>
    %5 = arith.addf %2, %4 : vector<2x32xf32>
    %cst_5 = arith.constant 1.000000e+00 : f32
    %6 = vector.broadcast %cst_5 : f32 to vector<32x1xf32>
    %cst_6 = arith.constant dense<0.000000e+00> : vector<2x1xf32>
    %7 = tpu.matmul %5, %6, %cst_6 {dimension_numbers = #tpu.dot_dimension_numbers<[1], [0], [0], [1], [0, 0, 1, 1], [], []>} : vector<2x32xf32>, vector<32x1xf32>, vector<2x1xf32> -> vector<2x1xf32>
    %cst_7 = arith.constant 3.125000e-02 : f32
    %8 = vector.broadcast %cst_7 : f32 to vector<2x1xf32>
    %9 = arith.mulf %7, %8 : vector<2x1xf32>
    %10 = vector.broadcast %9 : vector<2x1xf32> to vector<2x32xf32>
    %11 = arith.subf %5, %10 : vector<2x32xf32>
    %12 = arith.mulf %11, %11 : vector<2x32xf32>
    %cst_8 = arith.constant dense<0.000000e+00> : vector<2x1xf32>
    %13 = tpu.matmul %12, %6, %cst_8 {dimension_numbers = #tpu.dot_dimension_numbers<[1], [0], [0], [1], [0, 0, 1, 1], [], []>} : vector<2x32xf32>, vector<32x1xf32>, vector<2x1xf32> -> vector<2x1xf32>
    %cst_9 = arith.constant 3.125000e-02 : f32
    %14 = vector.broadcast %cst_9 : f32 to vector<2x1xf32>
    %15 = arith.mulf %13, %14 : vector<2x1xf32>
    %cst_10 = arith.constant 9.99999974E-6 : f32
    %16 = vector.broadcast %cst_10 : f32 to vector<2x1xf32>
    %17 = arith.addf %15, %16 : vector<2x1xf32>
    %18 = math.rsqrt %17 : vector<2x1xf32>
    %19 = vector.broadcast %18 : vector<2x1xf32> to vector<2x32xf32>
    %20 = arith.mulf %11, %19 : vector<2x32xf32>
    %c1 = arith.constant 1 : index
    %c0_11 = arith.constant 0 : index
    %21 = vector.load %arg3[%c1, %c0_11] : memref<3x32xf32, #tpu.memory_space<vmem>>, vector<1x32xf32>
    %22 = vector.broadcast %21 : vector<1x32xf32> to vector<2x32xf32>
    %23 = arith.mulf %20, %22 : vector<2x32xf32>
    %c2 = arith.constant 2 : index
    %c0_12 = arith.constant 0 : index
    %24 = vector.load %arg3[%c2, %c0_12] : memref<3x32xf32, #tpu.memory_space<vmem>>, vector<1x32xf32>
    %25 = vector.broadcast %24 : vector<1x32xf32> to vector<2x32xf32>
    %26 = arith.addf %23, %25 : vector<2x32xf32>
    %cst_13 = arith.constant 0.000000e+00 : f32
    %27 = vector.broadcast %cst_13 : f32 to vector<2x32xf32>
    %28 = arith.maximumf %26, %27 : vector<2x32xf32>
    %c0_14 = arith.constant 0 : index
    %c0_15 = arith.constant 0 : index
    %29 = vector.load %arg4[%c0_14, %c0_15] : memref<32x32xf32, #tpu.memory_space<vmem>>, vector<32x32xf32>
    %cst_16 = arith.constant dense<0.000000e+00> : vector<2x32xf32>
    %30 = tpu.matmul %28, %29, %cst_16 {dimension_numbers = #tpu.dot_dimension_numbers<[1], [0], [0], [1], [0, 0, 1, 1], [], []>} : vector<2x32xf32>, vector<32x32xf32>, vector<2x32xf32> -> vector<2x32xf32>
    %c0_17 = arith.constant 0 : index
    %c0_18 = arith.constant 0 : index
    %31 = vector.load %arg5[%c0_17, %c0_18] : memref<3x32xf32, #tpu.memory_space<vmem>>, vector<1x32xf32>
    %32 = vector.broadcast %31 : vector<1x32xf32> to vector<2x32xf32>
    %33 = arith.addf %30, %32 : vector<2x32xf32>
    %cst_19 = arith.constant 1.000000e+00 : f32
    %34 = vector.broadcast %cst_19 : f32 to vector<32x1xf32>
    %cst_20 = arith.constant dense<0.000000e+00> : vector<2x1xf32>
    %35 = tpu.matmul %33, %34, %cst_20 {dimension_numbers = #tpu.dot_dimension_numbers<[1], [0], [0], [1], [0, 0, 1, 1], [], []>} : vector<2x32xf32>, vector<32x1xf32>, vector<2x1xf32> -> vector<2x1xf32>
    %cst_21 = arith.constant 3.125000e-02 : f32
    %36 = vector.broadcast %cst_21 : f32 to vector<2x1xf32>
    %37 = arith.mulf %35, %36 : vector<2x1xf32>
    %38 = vector.broadcast %37 : vector<2x1xf32> to vector<2x32xf32>
    %39 = arith.subf %33, %38 : vector<2x32xf32>
    %40 = arith.mulf %39, %39 : vector<2x32xf32>
    %cst_22 = arith.constant dense<0.000000e+00> : vector<2x1xf32>
    %41 = tpu.matmul %40, %34, %cst_22 {dimension_numbers = #tpu.dot_dimension_numbers<[1], [0], [0], [1], [0, 0, 1, 1], [], []>} : vector<2x32xf32>, vector<32x1xf32>, vector<2x1xf32> -> vector<2x1xf32>
    %cst_23 = arith.constant 3.125000e-02 : f32
    %42 = vector.broadcast %cst_23 : f32 to vector<2x1xf32>
    %43 = arith.mulf %41, %42 : vector<2x1xf32>
    %cst_24 = arith.constant 9.99999974E-6 : f32
    %44 = vector.broadcast %cst_24 : f32 to vector<2x1xf32>
    %45 = arith.addf %43, %44 : vector<2x1xf32>
    %46 = math.rsqrt %45 : vector<2x1xf32>
    %47 = vector.broadcast %46 : vector<2x1xf32> to vector<2x32xf32>
    %48 = arith.mulf %39, %47 : vector<2x32xf32>
    %c1_25 = arith.constant 1 : index
    %c0_26 = arith.constant 0 : index
    %49 = vector.load %arg5[%c1_25, %c0_26] : memref<3x32xf32, #tpu.memory_space<vmem>>, vector<1x32xf32>
    %50 = vector.broadcast %49 : vector<1x32xf32> to vector<2x32xf32>
    %51 = arith.mulf %48, %50 : vector<2x32xf32>
    %c2_27 = arith.constant 2 : index
    %c0_28 = arith.constant 0 : index
    %52 = vector.load %arg5[%c2_27, %c0_28] : memref<3x32xf32, #tpu.memory_space<vmem>>, vector<1x32xf32>
    %53 = vector.broadcast %52 : vector<1x32xf32> to vector<2x32xf32>
    %54 = arith.addf %51, %53 : vector<2x32xf32>
    %cst_29 = arith.constant 0.000000e+00 : f32
    %55 = vector.broadcast %cst_29 : f32 to vector<2x32xf32>
    %56 = arith.maximumf %54, %55 : vector<2x32xf32>
    %c0_30 = arith.constant 0 : index
    %c0_31 = arith.constant 0 : index
    %57 = vector.load %arg6[%c0_30, %c0_31] : memref<32x4xf32, #tpu.memory_space<vmem>>, vector<32x4xf32>
    %cst_32 = arith.constant dense<0.000000e+00> : vector<2x4xf32>
    %58 = tpu.matmul %56, %57, %cst_32 {dimension_numbers = #tpu.dot_dimension_numbers<[1], [0], [0], [1], [0, 0, 1, 1], [], []>} : vector<2x32xf32>, vector<32x4xf32>, vector<2x4xf32> -> vector<2x4xf32>
    %c0_33 = arith.constant 0 : index
    %c0_34 = arith.constant 0 : index
    %59 = vector.load %arg7[%c0_33, %c0_34] : memref<1x4xf32, #tpu.memory_space<vmem>>, vector<1x4xf32>
    %60 = vector.broadcast %59 : vector<1x4xf32> to vector<2x4xf32>
    %61 = arith.addf %58, %60 : vector<2x4xf32>
    %62 = math.tanh %61 : vector<2x4xf32>
    %c0_35 = arith.constant 0 : index
    %c0_36 = arith.constant 0 : index
    %63 = vector.load %arg8[%c0_35, %c0_36] : memref<2x4xf32, #tpu.memory_space<vmem>>, vector<2x4xf32>
    tpu.vector_store %arg8[%c0_35, %c0_36], %62 {strides = array<i32>} : memref<2x4xf32, #tpu.memory_space<vmem>>, vector<2x4xf32>,
    return
  }
  func.func @transform_0(%arg0: i32) -> (i32, i32) {
    %c0_i32 = arith.constant 0 : i32
    %c0_i32_0 = arith.constant 0 : i32
    return %arg0, %c0_i32 : i32, i32
  }
  func.func @transform_1(%arg0: i32) -> (i32, i32) {
    %c0_i32 = arith.constant 0 : i32
    %c0_i32_0 = arith.constant 0 : i32
    %c0_i32_1 = arith.constant 0 : i32
    return %c0_i32, %c0_i32_0 : i32, i32
  }
  func.func @transform_2(%arg0: i32) -> (i32, i32) {
    %c0_i32 = arith.constant 0 : i32
    %c0_i32_0 = arith.constant 0 : i32
    %c0_i32_1 = arith.constant 0 : i32
    return %c0_i32, %c0_i32_0 : i32, i32
  }
  func.func @transform_3(%arg0: i32) -> (i32, i32) {
    %c0_i32 = arith.constant 0 : i32
    %c0_i32_0 = arith.constant 0 : i32
    %c0_i32_1 = arith.constant 0 : i32
    return %c0_i32, %c0_i32_0 : i32, i32
  }
  func.func @transform_4(%arg0: i32) -> (i32, i32) {
    %c0_i32 = arith.constant 0 : i32
    %c0_i32_0 = arith.constant 0 : i32
    %c0_i32_1 = arith.constant 0 : i32
    return %c0_i32, %c0_i32_0 : i32, i32
  }
  func.func @transform_5(%arg0: i32) -> (i32, i32) {
    %c0_i32 = arith.constant 0 : i32
    %c0_i32_0 = arith.constant 0 : i32
    %c0_i32_1 = arith.constant 0 : i32
    return %c0_i32, %c0_i32_0 : i32, i32
  }
  func.func @transform_6(%arg0: i32) -> (i32, i32) {
    %c0_i32 = arith.constant 0 : i32
    %c0_i32_0 = arith.constant 0 : i32
    %c0_i32_1 = arith.constant 0 : i32
    return %c0_i32, %c0_i32_0 : i32, i32
  }
  func.func @transform_7(%arg0: i32) -> (i32, i32) {
    %c0_i32 = arith.constant 0 : i32
    %c0_i32_0 = arith.constant 0 : i32
    return %arg0, %c0_i32 : i32, i32
  }
}

</mosaic_0001>

<llo_original>
// kernel: actor_forward.1
$region0: #{actor_forward.1}
  #allocation0 [shape = 'u32[]', space=smem, size = 0x4, offset = 0x4, fixed_abs, tag = 'smem constant byte address 0x4 - core index']
  #allocation1 [shape = 'u32[72,128]{1,0:T(1,128)}', space=vmem, size = 0x9000, scoped, tag = 'internal scratch']
  %s0 = inlined_call_operand.hbm [shape: f32[2,8], index: 0, kind: input, shape index: {}]
  %s1 = inlined_call_operand.hbm [shape: f32[8,32], index: 1, kind: input, shape index: {}]
  %s2 = inlined_call_operand.vmem [shape: f32[3,32], index: 2, kind: input, shape index: {}]
  %s3 = inlined_call_operand.vmem [shape: f32[32,32], index: 3, kind: input, shape index: {}]
  %s4 = inlined_call_operand.hbm [shape: f32[3,32], index: 4, kind: input, shape index: {}]
  %s5 = inlined_call_operand.vmem [shape: f32[32,4], index: 5, kind: input, shape index: {}]
  %s6 = inlined_call_operand.vmem [shape: f32[1,4], index: 6, kind: input, shape index: {}]
  %s7 = inlined_call_operand.hbm [shape: f32[2,4], index: 7, kind: output, shape index: {}]
  %s8 = sld [smem:[#allocation0]]
  $region50: #{actor_forward.1} parent=0
    _
  %s10 = ssub.s32 1, %s8
  %s11 = scalar_select 0, %s10, %s8
  $region1: #{actor_forward.1} parent=0
    #allocation2 [shape = 'u8[1024]{0}', space=vmem, size = 0x400, scoped, tag = 'input window, operand 0, single buffered']
    #allocation3 [shape = 's32[1]{0}', space=sflag, size = 0x4, scoped, tag = 'scoped memory for actor_forward.1']
    #allocation4 [shape = 's32[1]{0}', space=sflag, size = 0x4, scoped, tag = 'scoped memory for actor_forward.1']
    #allocation5 [shape = 'u8[4096]{0}', space=vmem, size = 0x1000, scoped, tag = 'input window, operand 1, single buffered']
    #allocation6 [shape = 's32[1]{0}', space=sflag, size = 0x4, scoped, tag = 'scoped memory for actor_forward.1']
    #allocation7 [shape = 'u8[2048]{0}', space=vmem, size = 0x800, scoped, tag = 'input window, operand 4, single buffered']
    #allocation8 [shape = 'u8[1024]{0}', space=vmem, size = 0x400, scoped, tag = 'output window, operand 0, single buffered']
    %12 = vsyncpa [#allocation3], 0
    %13 = vsyncpa [#allocation6], 0
    %14 = vsyncpa [#allocation4], 0
    // Predicated region
    $region2: #{actor_forward.1} parent=1 // pred_check
      _
    $region3: #{actor_forward.1} parent=1 // pred_check_branch
      %16 = sbr.rel (0) target = $region5
    $region4: #{actor_forward.1} parent=1 // pred_region
      %18 = vsyncadd [#allocation3], 0
      %s20 = sshll.u32 %s0, 4
      %s21 = int_to_ptr.hbm [resolvable:$true] %s20
      %s22 = sshll.u32 [#allocation2], 4
      %s23 = int_to_ptr.vmem [resolvable:$true] %s22
      %25 = dma.hbm_to_vmem [thread:$0]  %s21, 32, %s23, [#allocation3]
    $region5: #{actor_forward.1} parent=1 // pred_fallthru
      _
    // Predicated region
    $region6: #{actor_forward.1} parent=1 // pred_check
      _
    $region7: #{actor_forward.1} parent=1 // pred_check_branch
      %27 = sbr.rel (0) target = $region9
    $region8: #{actor_forward.1} parent=1 // pred_region
      %29 = vsyncadd [#allocation6], 0
      %s31 = sshll.u32 %s1, 4
      %s32 = int_to_ptr.hbm [resolvable:$true] %s31
      %s33 = sshll.u32 [#allocation5], 4
      %s34 = int_to_ptr.vmem [resolvable:$true] %s33
      %36 = dma.hbm_to_vmem [thread:$0]  %s32, 128, %s34, [#allocation6]
    $region9: #{actor_forward.1} parent=1 // pred_fallthru
      _
    // Predicated region
    $region10: #{actor_forward.1} parent=1 // pred_check
      _
    $region11: #{actor_forward.1} parent=1 // pred_check_branch
      %38 = sbr.rel (0) target = $region13
    $region12: #{actor_forward.1} parent=1 // pred_region
      _
    $region13: #{actor_forward.1} parent=1 // pred_fallthru
      _
    // Predicated region
    $region14: #{actor_forward.1} parent=1 // pred_check
      _
    $region15: #{actor_forward.1} parent=1 // pred_check_branch
      %40 = sbr.rel (0) target = $region17
    $region16: #{actor_forward.1} parent=1 // pred_region
      _
    $region17: #{actor_forward.1} parent=1 // pred_fallthru
      _
    // Predicated region
    $region18: #{actor_forward.1} parent=1 // pred_check
      _
    $region19: #{actor_forward.1} parent=1 // pred_check_branch
      %42 = sbr.rel (0) target = $region21
    $region20: #{actor_forward.1} parent=1 // pred_region
      %44 = vsyncadd [#allocation6], 0
      %s46 = sshll.u32 %s4, 4
      %s47 = int_to_ptr.hbm [resolvable:$true] %s46
      %s48 = sshll.u32 [#allocation7], 4
      %s49 = int_to_ptr.vmem [resolvable:$true] %s48
      %51 = dma.hbm_to_vmem [thread:$0]  %s47, 64, %s49, [#allocation6]
    $region21: #{actor_forward.1} parent=1 // pred_fallthru
      _
    // Predicated region
    $region22: #{actor_forward.1} parent=1 // pred_check
      _
    $region23: #{actor_forward.1} parent=1 // pred_check_branch
      %53 = sbr.rel (0) target = $region25
    $region24: #{actor_forward.1} parent=1 // pred_region
      _
    $region25: #{actor_forward.1} parent=1 // pred_fallthru
      _
    // Predicated region
    $region26: #{actor_forward.1} parent=1 // pred_check
      _
    $region27: #{actor_forward.1} parent=1 // pred_check_branch
      %55 = sbr.rel (0) target = $region29
    $region28: #{actor_forward.1} parent=1 // pred_region
      _
    $region29: #{actor_forward.1} parent=1 // pred_fallthru
      _
    // Predicated region
    $region30: #{actor_forward.1} parent=1 // pred_check
      _
    $region31: #{actor_forward.1} parent=1 // pred_check_branch
      %57 = sbr.rel (0) target = $region33
    $region32: #{actor_forward.1} parent=1 // pred_region
      %59 = dma.done [#allocation3], 32
    $region33: #{actor_forward.1} parent=1 // pred_fallthru
      _
    // Predicated region
    $region34: #{actor_forward.1} parent=1 // pred_check
      _
    $region35: #{actor_forward.1} parent=1 // pred_check_branch
      %61 = sbr.rel (0) target = $region37
    $region36: #{actor_forward.1} parent=1 // pred_region
      %63 = dma.done [#allocation6], 128
    $region37: #{actor_forward.1} parent=1 // pred_fallthru
      _
    // Predicated region
    $region38: #{actor_forward.1} parent=1 // pred_check
      _
    $region39: #{actor_forward.1} parent=1 // pred_check_branch
      %65 = sbr.rel (0) target = $region41
    $region40: #{actor_forward.1} parent=1 // pred_region
      %67 = dma.done [#allocation6], 64
    $region41: #{actor_forward.1} parent=1 // pred_fallthru
      _
    %v68 = vld [vmem:[#allocation2] sm:$0x3]
    %v69 = vld [vmem:[#allocation5] sm:$0xff]
    %v70 = vld [vmem:[%s2] sm:$0x1]
    %v71 = vperm.slane %v70, 0
    %vm72 = vcmask 64512
    %v74 = vsel %vm72, %v68, 0
    %76 = vmatpush.msra.mxu0 0.0
    %77 = vmatpush.msra.mxu0 0.0
    %78 = vmatpush.msra.mxu0 0.0
    %79 = vmatpush.msra.mxu0 0.0
    %80 = vmatpush.msra.mxu0 0.0
    %81 = vmatpush.msra.mxu0 0.0
    %82 = vmatpush.msra.mxu0 0.0
    %83 = vmatpush.msra.mxu0 0.0
    %84 = vmatpush.msra.mxu0 0.0
    %85 = vmatpush.msra.mxu0 0.0
    %86 = vmatpush.msra.mxu0 0.0
    %87 = vmatpush.msra.mxu0 0.0
    %88 = vmatpush.msra.mxu0 0.0
    %89 = vmatpush.msra.mxu0 0.0
    %90 = vmatpush.msra.mxu0 0.0
    %91 = vmatpush.msra.mxu0 %v69
    %92 = vmatmul.f32.gmra.mxu0 %v74
    %v93 = vpop.f32.mrf.mxu0
    %v94 = vadd.f32 %v71, %v93
    %95 = vdwg.mxu0
    %vm96 = vcmask 261120
    %v98 = vsel %vm96, %v94, 0
    %100 = vmatpush.msra.mxu0 0.0
    %101 = vmatpush.msra.mxu0 0.0
    %102 = vmatpush.msra.mxu0 0.0
    %103 = vmatpush.msra.mxu0 0.0
    %104 = vmatpush.msra.mxu0 0.0
    %105 = vmatpush.msra.mxu0 0.0
    %106 = vmatpush.msra.mxu0 0.0
    %107 = vmatpush.msra.mxu0 0.0
    %108 = vmatpush.msra.mxu0 0.0
    %109 = vmatpush.msra.mxu0 0.0
    %110 = vmatpush.msra.mxu0 0.0
    %111 = vmatpush.msra.mxu0 0.0
    %112 = vmatpush.msra.mxu0 1.0
    %113 = vmatpush.msra.mxu0 1.0
    %114 = vmatpush.msra.mxu0 1.0
    %115 = vmatpush.msra.mxu0 1.0
    %116 = vmatmul.f32.gmra.mxu0 %v98
    %v117 = vpop.f32.mrf.mxu0
    %v118 = vadd.f32 0.0, %v117
    %119 = vdwg.mxu0
    %v120 = vmul.f32 %v118, 0.03125
    %122 = vset.pattern.permute.xlu0 0
    %123 = vperm.xlu0 %122, %v120
    %v124 = vpop.permute.xlu0 %123
    %v126 = vsub.f32 %v94, %v124
    %v127 = vmul.f32 %v126, %v126
    %v129 = vsel %vm96, %v127, 0
    %131 = vmatpush.msra.mxu0 0.0
    %132 = vmatpush.msra.mxu0 0.0
    %133 = vmatpush.msra.mxu0 0.0
    %134 = vmatpush.msra.mxu0 0.0
    %135 = vmatpush.msra.mxu0 0.0
    %136 = vmatpush.msra.mxu0 0.0
    %137 = vmatpush.msra.mxu0 0.0
    %138 = vmatpush.msra.mxu0 0.0
    %139 = vmatpush.msra.mxu0 0.0
    %140 = vmatpush.msra.mxu0 0.0
    %141 = vmatpush.msra.mxu0 0.0
    %142 = vmatpush.msra.mxu0 0.0
    %143 = vmatpush.msra.mxu0 1.0
    %144 = vmatpush.msra.mxu0 1.0
    %145 = vmatpush.msra.mxu0 1.0
    %146 = vmatpush.msra.mxu0 1.0
    %147 = vmatmul.f32.gmra.mxu0 %v129
    %v148 = vpop.f32.mrf.mxu0
    %v149 = vadd.f32 0.0, %v148
    %150 = vdwg.mxu0
    %v151 = vmul.f32 %v149, 0.03125
    %v152 = vadd.f32 %v151, 1e-05
    %v153 = vrsqrt.pop %v152
    %v154 = vmul.f32 %v153, %v152
    %v155 = vmul.f32 %v154, %v153
    %v156 = vmul.f32 0.5, %v155
    %v157 = vsub.f32 1.5, %v156
    %v158 = vmul.f32 %v153, %v157
    %vm159 = vweird.f32 %v152
    %vm160 = vweird.f32 %v153
    %vm161 = vmor %vm159, %vm160
    %v162 = vsel %vm161, %v153, %v158
    %164 = vset.pattern.permute.xlu0 0
    %165 = vperm.xlu0 %164, %v162
    %v166 = vpop.permute.xlu0 %165
    %v168 = vmul.f32 %v126, %v166
    %v169 = vld [vmem:[%s2 + $0x1] sm:$0x1]
    %v170 = vperm.slane %v169, 0
    %v171 = vmul.f32 %v168, %v170
    %v172 = vld [vmem:[%s2 + $0x2] sm:$0x1]
    %v173 = vperm.slane %v172, 0
    %v174 = vadd.f32 %v171, %v173
    %v175 = vmax.f32 %v174, 0.0
    %v176 = vld [vmem:[%s3] sm:$0xff]
    %v177 = vld [vmem:[%s3 + $0x8] sm:$0xff]
    %v178 = vld [vmem:[%s3 + $0x10] sm:$0xff]
    %v179 = vld [vmem:[%s3 + $0x18] sm:$0xff]
    %v180 = vld [vmem:[#allocation7] sm:$0x1]
    %v181 = vperm.slane %v180, 0
    %v183 = vsel %vm96, %v175, 0
    %185 = vmatpush.msra.mxu0 0.0
    %186 = vmatpush.msra.mxu0 0.0
    %187 = vmatpush.msra.mxu0 0.0
    %188 = vmatpush.msra.mxu0 0.0
    %189 = vmatpush.msra.mxu0 0.0
    %190 = vmatpush.msra.mxu0 0.0
    %191 = vmatpush.msra.mxu0 0.0
    %192 = vmatpush.msra.mxu0 0.0
    %193 = vmatpush.msra.mxu0 0.0
    %194 = vmatpush.msra.mxu0 0.0
    %195 = vmatpush.msra.mxu0 0.0
    %196 = vmatpush.msra.mxu0 0.0
    %197 = vmatpush.msra.mxu0 %v179
    %198 = vmatpush.msra.mxu0 %v178
    %199 = vmatpush.msra.mxu0 %v177
    %200 = vmatpush.msra.mxu0 %v176
    %201 = vmatmul.f32.gmra.mxu0 %v183
    %v202 = vpop.f32.mrf.mxu0
    %v203 = vadd.f32 %v181, %v202
    %204 = vdwg.mxu0
    %v206 = vsel %vm96, %v203, 0
    %208 = vmatpush.msra.mxu0 0.0
    %209 = vmatpush.msra.mxu0 0.0
    %210 = vmatpush.msra.mxu0 0.0
    %211 = vmatpush.msra.mxu0 0.0
    %212 = vmatpush.msra.mxu0 0.0
    %213 = vmatpush.msra.mxu0 0.0
    %214 = vmatpush.msra.mxu0 0.0
    %215 = vmatpush.msra.mxu0 0.0
    %216 = vmatpush.msra.mxu0 0.0
    %217 = vmatpush.msra.mxu0 0.0
    %218 = vmatpush.msra.mxu0 0.0
    %219 = vmatpush.msra.mxu0 0.0
    %220 = vmatpush.msra.mxu0 1.0
    %221 = vmatpush.msra.mxu0 1.0
    %222 = vmatpush.msra.mxu0 1.0
    %223 = vmatpush.msra.mxu0 1.0
    %224 = vmatmul.f32.gmra.mxu0 %v206
    %v225 = vpop.f32.mrf.mxu0
    %v226 = vadd.f32 0.0, %v225
    %227 = vdwg.mxu0
    %v228 = vmul.f32 %v226, 0.03125
    %230 = vset.pattern.permute.xlu0 0
    %231 = vperm.xlu0 %230, %v228
    %v232 = vpop.permute.xlu0 %231
    %v234 = vsub.f32 %v203, %v232
    %v235 = vmul.f32 %v234, %v234
    %v237 = vsel %vm96, %v235, 0
    %239 = vmatpush.msra.mxu0 0.0
    %240 = vmatpush.msra.mxu0 0.0
    %241 = vmatpush.msra.mxu0 0.0
    %242 = vmatpush.msra.mxu0 0.0
    %243 = vmatpush.msra.mxu0 0.0
    %244 = vmatpush.msra.mxu0 0.0
    %245 = vmatpush.msra.mxu0 0.0
    %246 = vmatpush.msra.mxu0 0.0
    %247 = vmatpush.msra.mxu0 0.0
    %248 = vmatpush.msra.mxu0 0.0
    %249 = vmatpush.msra.mxu0 0.0
    %250 = vmatpush.msra.mxu0 0.0
    %251 = vmatpush.msra.mxu0 1.0
    %252 = vmatpush.msra.mxu0 1.0
    %253 = vmatpush.msra.mxu0 1.0
    %254 = vmatpush.msra.mxu0 1.0
    %255 = vmatmul.f32.gmra.mxu0 %v237
    %v256 = vpop.f32.mrf.mxu0
    %v257 = vadd.f32 0.0, %v256
    %258 = vdwg.mxu0
    %v259 = vmul.f32 %v257, 0.03125
    %v260 = vadd.f32 %v259, 1e-05
    %v261 = vrsqrt.pop %v260
    %v262 = vmul.f32 %v261, %v260
    %v263 = vmul.f32 %v262, %v261
    %v264 = vmul.f32 0.5, %v263
    %v265 = vsub.f32 1.5, %v264
    %v266 = vmul.f32 %v261, %v265
    %vm267 = vweird.f32 %v260
    %vm268 = vweird.f32 %v261
    %vm269 = vmor %vm267, %vm268
    %v270 = vsel %vm269, %v261, %v266
    %272 = vset.pattern.permute.xlu0 0
    %273 = vperm.xlu0 %272, %v270
    %v274 = vpop.permute.xlu0 %273
    %v276 = vmul.f32 %v234, %v274
    %v277 = vld [vmem:[#allocation7 + $0x1] sm:$0x1]
    %v278 = vperm.slane %v277, 0
    %v279 = vmul.f32 %v276, %v278
    %v280 = vld [vmem:[#allocation7 + $0x2] sm:$0x1]
    %v281 = vperm.slane %v280, 0
    %v282 = vadd.f32 %v279, %v281
    %v283 = vmax.f32 %v282, 0.0
    %v284 = vld [vmem:[%s5] sm:$0xff]
    %v285 = vld [vmem:[%s5 + $0x8] sm:$0xff]
    %v286 = vld [vmem:[%s5 + $0x10] sm:$0xff]
    %v287 = vld [vmem:[%s5 + $0x18] sm:$0xff]
    %v288 = vld [vmem:[%s6] sm:$0x1]
    %v290 = vperm.slane %v288, 0
    %v293 = vsel %vm96, %v283, 0
    %295 = vmatpush.msra.mxu0 0.0
    %296 = vmatpush.msra.mxu0 0.0
    %297 = vmatpush.msra.mxu0 0.0
    %298 = vmatpush.msra.mxu0 0.0
    %299 = vmatpush.msra.mxu0 0.0
    %300 = vmatpush.msra.mxu0 0.0
    %301 = vmatpush.msra.mxu0 0.0
    %302 = vmatpush.msra.mxu0 0.0
    %303 = vmatpush.msra.mxu0 0.0
    %304 = vmatpush.msra.mxu0 0.0
    %305 = vmatpush.msra.mxu0 0.0
    %306 = vmatpush.msra.mxu0 0.0
    %307 = vmatpush.msra.mxu0 %v287
    %308 = vmatpush.msra.mxu0 %v286
    %309 = vmatpush.msra.mxu0 %v285
    %310 = vmatpush.msra.mxu0 %v284
    %311 = vmatmul.f32.gmra.mxu0 %v293
    %v312 = vpop.f32.mrf.mxu0
    %v313 = vadd.f32 %v290, %v312
    %314 = vdwg.mxu0
    %v315 = vtanh.pop %v313
    %vm316 = vcmask 25600
    %317 = vst.msk [vmem:[#allocation8] sm:$0x3] %vm316, %v315
    // Predicated region
    $region42: #{actor_forward.1} parent=1 // pred_check
      _
    $region43: #{actor_forward.1} parent=1 // pred_check_branch
      %319 = sbr.rel (0) target = $region45
    $region44: #{actor_forward.1} parent=1 // pred_region
      %321 = vsyncadd [#allocation4], 0
      %s323 = sshll.u32 [#allocation8], 4
      %s324 = int_to_ptr.vmem [resolvable:$true] %s323
      %s325 = sshll.u32 %s7, 4
      %s326 = int_to_ptr.hbm [resolvable:$true] %s325
      %328 = dma.vmem_to_hbm [thread:$0]  %s324, 32, %s326, [#allocation4]
    $region45: #{actor_forward.1} parent=1 // pred_fallthru
      _
    // Predicated region
    $region46: #{actor_forward.1} parent=1 // pred_check
      _
    $region47: #{actor_forward.1} parent=1 // pred_check_branch
      %330 = sbr.rel (0) target = $region49
    $region48: #{actor_forward.1} parent=1 // pred_region
      %332 = dma.done [#allocation4], 32
    $region49: #{actor_forward.1} parent=1 // pred_fallthru
      _
    %333 = vsyncpa [#allocation3], 1
    %334 = vsyncpa [#allocation6], 1
    %335 = vsyncpa [#allocation4], 1

</llo_original>
